<compile_context>
chip_gen: v7x
topology: tpu7x:2x2x1
jax: 0.10.0
libtpu: 0.0.40
codegen_flags: <defaults>
</compile_context>

<pallas_src>
import math

import jax
import jax.numpy as jnp
from jax import lax
from jax.experimental import pallas as pl
from jax.experimental.pallas import tpu as pltpu


def _round_up(x, m):
    return (x + m - 1) // m * m


def _td_matmul_kernel(d_ref, w_ref, b_ref, out_ref):
    # d: (TB, K)  w: (Npad, K)  b: (1, Npad)  out: (TB, Npad)
    # Contract K of d against K of W (PyTorch layout) -> no wrapper transpose.
    z = lax.dot_general(
        d_ref[...], w_ref[...],
        dimension_numbers=(((1,), (1,)), ((), ())),
        preferred_element_type=jnp.float32)
    z = z + b_ref[...]                                  # (TB,Npad) + (1,Npad)
    out_ref[...] = jnp.exp(-jnp.maximum(z, 0.0)).astype(out_ref.dtype)


def _td_diag_kernel(d_ref, w_ref, b_ref, out_ref):
    # Pure elementwise: gamma = exp(-relu(d * diag(W) + b)).  VPU + EUP only.
    z = d_ref[...].astype(jnp.float32) * w_ref[...] + b_ref[...]
    out_ref[...] = jnp.exp(-jnp.maximum(z, 0.0)).astype(out_ref.dtype)


def temporal_decay(d, W, b, *, diag=False):
    """gamma = exp(-relu(F.linear(d, W*(I if diag else 1), b)))

    d: (..., input_size) float32   (leading dims folded into batch)
    W: (output_size, input_size) float32   (PyTorch convention)
    b: (output_size,) float32
    """
    orig_shape = d.shape
    input_size = orig_shape[-1]
    output_size = W.shape[0]

    # Fold any leading time/sequence dims into an effective batch.
    d2 = d.reshape(-1, input_size)
    batch = d2.shape[0]

    # Lane-dense feature dim (multiple of 128) and sublane-aligned batch tile.
    n_pad = _round_up(output_size, 128)
    b_pad8 = _round_up(max(batch, 1), 8)
    tb = min(512, b_pad8)
    batch_padded = _round_up(b_pad8, tb)
    grid = (batch_padded // tb,)

    d_pad = jnp.pad(d2, ((0, batch_padded - batch), (0, 0)))
    b_vec = jnp.pad(b, (0, n_pad - output_size)).reshape(1, n_pad)

    if diag:
        assert input_size == output_size
        # Only the diagonal of W contributes: elementwise kernel, no matmul.
        w_diag = jnp.pad(jnp.diagonal(W), (0, n_pad - output_size)).reshape(1, n_pad)
        d_pad = jnp.pad(d_pad, ((0, 0), (0, n_pad - input_size)))

        out = pl.pallas_call(
            _td_diag_kernel,
            out_shape=jax.ShapeDtypeStruct((batch_padded, n_pad), d.dtype),
            grid_spec=pltpu.PrefetchScalarGridSpec(
                num_scalar_prefetch=0,
                grid=grid,
                in_specs=[
                    pl.BlockSpec((tb, n_pad), lambda i: (i, 0)),
                    pl.BlockSpec((1, n_pad), lambda i: (0, 0)),
                    pl.BlockSpec((1, n_pad), lambda i: (0, 0)),
                ],
                out_specs=pl.BlockSpec((tb, n_pad), lambda i: (i, 0)),
            ),
            compiler_params=pltpu.CompilerParams(
                dimension_semantics=("parallel",)),
        )(d_pad, w_diag, b_vec)
    else:
        # Pad output rows of W with zeros (padded outputs -> exp(-relu(0)) = 1,
        # sliced off below).  W stays in (out, in) layout; kernel contracts K.
        w_pad = jnp.pad(W, ((0, n_pad - output_size), (0, 0)))

        out = pl.pallas_call(
            _td_matmul_kernel,
            out_shape=jax.ShapeDtypeStruct((batch_padded, n_pad), d.dtype),
            grid_spec=pltpu.PrefetchScalarGridSpec(
                num_scalar_prefetch=0,
                grid=grid,
                in_specs=[
                    pl.BlockSpec((tb, input_size), lambda i: (i, 0)),
                    pl.BlockSpec((n_pad, input_size), lambda i: (0, 0)),
                    pl.BlockSpec((1, n_pad), lambda i: (0, 0)),
                ],
                out_specs=pl.BlockSpec((tb, n_pad), lambda i: (i, 0)),
            ),
            compiler_params=pltpu.CompilerParams(
                dimension_semantics=("parallel",)),
        )(d_pad, w_pad, b_vec)

    out = out[:batch, :output_size]
    return out.reshape(orig_shape[:-1] + (output_size,))


def _init_params(key, input_size, output_size):
    # Matches reset_parameters(): uniform(-stdv, stdv), stdv = 1/sqrt(output_size)
    stdv = 1.0 / math.sqrt(output_size)
    kw, kb = jax.random.split(key)
    W = jax.random.uniform(kw, (output_size, input_size),
                           minval=-stdv, maxval=stdv, dtype=jnp.float32)
    b = jax.random.uniform(kb, (output_size,),
                           minval=-stdv, maxval=stdv, dtype=jnp.float32)
    return W, b


if __name__ == "__main__":
    key = jax.random.PRNGKey(0)
    k_d, k_d3, k_p1, k_p2 = jax.random.split(key, 4)

    batch, hidden = 8, 32

    # deltas "d" are non-negative time gaps in RITS
    d = jax.random.uniform(k_d, (batch, hidden), dtype=jnp.float32) * 5.0

    # diag=False case (e.g. input->hidden decay)
    W1, b1 = _init_params(k_p1, hidden, hidden)
    gamma1 = temporal_decay(d, W1, b1, diag=False)

    # diag=True case (feature-wise decay, identity-masked W)
    W2, b2 = _init_params(k_p2, hidden, hidden)
    gamma2 = temporal_decay(d, W2, b2, diag=True)

    # 3-D input: leading (seq) dim folded into batch by the wrapper
    d3 = jax.random.uniform(k_d3, (2, 5, hidden), dtype=jnp.float32) * 5.0
    gamma3 = temporal_decay(d3, W1, b1, diag=False)

    jax.block_until_ready((gamma1, gamma2, gamma3))

    # reference checks in plain JAX
    ref1 = jnp.exp(-jnp.maximum(d @ W1.T + b1, 0.0))
    ref2 = jnp.exp(-jnp.maximum(d @ (W2 * jnp.eye(hidden)).T + b2, 0.0))
    ref3 = jnp.exp(-jnp.maximum(jnp.einsum('bth,oh->bto', d3, W1) + b1, 0.0))
    assert jnp.allclose(gamma1, ref1, atol=1e-5), "diag=False mismatch"
    assert jnp.allclose(gamma2, ref2, atol=1e-5), "diag=True mismatch"
    assert jnp.allclose(gamma3, ref3, atol=1e-5), "3-D input mismatch"

    print("KERNEL_OK")
</pallas_src>

<mosaic_0001>
module attributes {stable_mosaic.version = 11 : i64} {
  func.func @_td_matmul_kernel(%arg0: i32, %arg1: memref<8x32xf32, #tpu.memory_space<vmem>>, %arg2: memref<128x32xf32, #tpu.memory_space<vmem>>, %arg3: memref<1x128xf32, #tpu.memory_space<vmem>>, %arg4: memref<8x128xf32, #tpu.memory_space<vmem>>) attributes {dimension_semantics = [#tpu.dimension_semantics<parallel>], iteration_bounds = array<i64: 1>, scalar_prefetch = 0 : i64, scratch_operands = 0 : i64, tpu.core_type = #tpu.core_type<tc>, window_params = [{transform_indices = @transform_0, window_bounds = array<i64: 8, 32>}, {pipeline_mode = #tpu.pipeline_mode<synchronous>, transform_indices = @transform_1, window_bounds = array<i64: 128, 32>}, {pipeline_mode = #tpu.pipeline_mode<synchronous>, transform_indices = @transform_2, window_bounds = array<i64: 1, 128>}, {transform_indices = @transform_3, window_bounds = array<i64: 8, 128>}]} {
    %c0 = arith.constant 0 : index
    %c0_0 = arith.constant 0 : index
    %0 = vector.load %arg1[%c0, %c0_0] : memref<8x32xf32, #tpu.memory_space<vmem>>, vector<8x32xf32>
    %c0_1 = arith.constant 0 : index
    %c0_2 = arith.constant 0 : index
    %1 = vector.load %arg2[%c0_1, %c0_2] : memref<128x32xf32, #tpu.memory_space<vmem>>, vector<128x32xf32>
    %cst = arith.constant dense<0.000000e+00> : vector<8x128xf32>
    %2 = tpu.matmul %0, %1, %cst {dimension_numbers = #tpu.dot_dimension_numbers<[1], [1], [0], [0], [0, 0, 1, 0], [], []>} : vector<8x32xf32>, vector<128x32xf32>, vector<8x128xf32> -> vector<8x128xf32>
    %c0_3 = arith.constant 0 : index
    %c0_4 = arith.constant 0 : index
    %3 = vector.load %arg3[%c0_3, %c0_4] : memref<1x128xf32, #tpu.memory_space<vmem>>, vector<1x128xf32>
    %4 = vector.broadcast %3 : vector<1x128xf32> to vector<8x128xf32>
    %5 = arith.addf %2, %4 : vector<8x128xf32>
    %cst_5 = arith.constant 0.000000e+00 : f32
    %6 = vector.broadcast %cst_5 : f32 to vector<8x128xf32>
    %7 = arith.maximumf %5, %6 : vector<8x128xf32>
    %cst_6 = arith.constant 0.000000e+00 : f32
    %8 = vector.broadcast %cst_6 : f32 to vector<8x128xf32>
    %9 = arith.subf %8, %7 : vector<8x128xf32>
    %10 = math.exp %9 : vector<8x128xf32>
    %c0_7 = arith.constant 0 : index
    %c0_8 = arith.constant 0 : index
    %11 = vector.load %arg4[%c0_7, %c0_8] : memref<8x128xf32, #tpu.memory_space<vmem>>, vector<8x128xf32>
    tpu.vector_store %arg4[%c0_7, %c0_8], %10 {strides = array<i32>} : memref<8x128xf32, #tpu.memory_space<vmem>>, vector<8x128xf32>,
    return
  }
  func.func @transform_0(%arg0: i32) -> (i32, i32) {
    %c0_i32 = arith.constant 0 : i32
    %c0_i32_0 = arith.constant 0 : i32
    return %arg0, %c0_i32 : i32, i32
  }
  func.func @transform_1(%arg0: i32) -> (i32, i32) {
    %c0_i32 = arith.constant 0 : i32
    %c0_i32_0 = arith.constant 0 : i32
    %c0_i32_1 = arith.constant 0 : i32
    return %c0_i32, %c0_i32_0 : i32, i32
  }
  func.func @transform_2(%arg0: i32) -> (i32, i32) {
    %c0_i32 = arith.constant 0 : i32
    %c0_i32_0 = arith.constant 0 : i32
    %c0_i32_1 = arith.constant 0 : i32
    return %c0_i32, %c0_i32_0 : i32, i32
  }
  func.func @transform_3(%arg0: i32) -> (i32, i32) {
    %c0_i32 = arith.constant 0 : i32
    %c0_i32_0 = arith.constant 0 : i32
    return %arg0, %c0_i32 : i32, i32
  }
}

</mosaic_0001>

<llo_original>
// kernel: tpu_custom_call.1
$region0: #{tpu_custom_call.1}
  #allocation0 [shape = 'u32[]', space=smem, size = 0x4, offset = 0x4, fixed_abs, tag = 'smem constant byte address 0x4 - core index']
  #allocation1 [shape = 'u32[144,128]{1,0:T(1,128)}', space=vmem, size = 0x12000, scoped, tag = 'internal scratch']
  %s0 = inlined_call_operand.vmem [shape: f32[8,32], index: 0, kind: input, shape index: {}]
  %s1 = inlined_call_operand.vmem [shape: f32[128,32], index: 1, kind: input, shape index: {}]
  %s2 = inlined_call_operand.vmem [shape: f32[1,128], index: 2, kind: input, shape index: {}]
  %s3 = inlined_call_operand.hbm [shape: f32[8,128], index: 3, kind: output, shape index: {}]
  %s4 = sld [smem:[#allocation0]]
  $region22: #{tpu_custom_call.1} parent=0
    _
  %s6 = ssub.s32 1, %s4
  %s7 = scalar_select 0, %s6, %s4
  $region1: #{tpu_custom_call.1} parent=0
    #allocation2 [shape = 'u8[4096]{0}', space=vmem, size = 0x1000, scoped, tag = 'output window, operand 0, single buffered']
    #allocation3 [shape = 's32[1]{0}', space=sflag, size = 0x4, scoped, tag = 'scoped memory for tpu_custom_call.1']
    %8 = vsyncpa [#allocation3], 0
    // Predicated region
    $region2: #{tpu_custom_call.1} parent=1 // pred_check
      _
    $region3: #{tpu_custom_call.1} parent=1 // pred_check_branch
      %10 = sbr.rel (0) target = $region5
    $region4: #{tpu_custom_call.1} parent=1 // pred_region
      _
    $region5: #{tpu_custom_call.1} parent=1 // pred_fallthru
      _
    // Predicated region
    $region6: #{tpu_custom_call.1} parent=1 // pred_check
      _
    $region7: #{tpu_custom_call.1} parent=1 // pred_check_branch
      %12 = sbr.rel (0) target = $region9
    $region8: #{tpu_custom_call.1} parent=1 // pred_region
      _
    $region9: #{tpu_custom_call.1} parent=1 // pred_fallthru
      _
    // Predicated region
    $region10: #{tpu_custom_call.1} parent=1 // pred_check
      _
    $region11: #{tpu_custom_call.1} parent=1 // pred_check_branch
      %14 = sbr.rel (0) target = $region13
    $region12: #{tpu_custom_call.1} parent=1 // pred_region
      _
    $region13: #{tpu_custom_call.1} parent=1 // pred_fallthru
      _
    %v15 = vld [vmem:[%s0] sm:$0xff]
    %v16 = vld [vmem:[%s1] sm:$0xff]
    %v17 = vld [vmem:[%s1 + $0x8] sm:$0xff]
    %v18 = vld [vmem:[%s1 + $0x10] sm:$0xff]
    %v19 = vld [vmem:[%s1 + $0x18] sm:$0xff]
    %v20 = vld [vmem:[%s1 + $0x20] sm:$0xff]
    %v21 = vld [vmem:[%s1 + $0x28] sm:$0xff]
    %v22 = vld [vmem:[%s1 + $0x30] sm:$0xff]
    %v23 = vld [vmem:[%s1 + $0x38] sm:$0xff]
    %v24 = vld [vmem:[%s1 + $0x40] sm:$0xff]
    %v25 = vld [vmem:[%s1 + $0x48] sm:$0xff]
    %v26 = vld [vmem:[%s1 + $0x50] sm:$0xff]
    %v27 = vld [vmem:[%s1 + $0x58] sm:$0xff]
    %v28 = vld [vmem:[%s1 + $0x60] sm:$0xff]
    %v29 = vld [vmem:[%s1 + $0x68] sm:$0xff]
    %v30 = vld [vmem:[%s1 + $0x70] sm:$0xff]
    %v31 = vld [vmem:[%s1 + $0x78] sm:$0xff]
    %v32 = vld [vmem:[%s2] sm:$0x1]
    %v34 = vlaneseq
    %v35 = vshrl.u32 %v34, 7
    %v36 = vsub.s32 0, %v35
    %v37 = vrot.slane %v32, %v36
    %vm39 = vcmask 261120
    %v41 = vsel %vm39, %v15, 0
    %v44 = vsel %vm39, %v16, 0
    %v47 = vsel %vm39, %v17, 0
    %v50 = vsel %vm39, %v18, 0
    %v53 = vsel %vm39, %v19, 0
    %v56 = vsel %vm39, %v20, 0
    %v59 = vsel %vm39, %v21, 0
    %v62 = vsel %vm39, %v22, 0
    %v65 = vsel %vm39, %v23, 0
    %v68 = vsel %vm39, %v24, 0
    %v71 = vsel %vm39, %v25, 0
    %v74 = vsel %vm39, %v26, 0
    %v77 = vsel %vm39, %v27, 0
    %v80 = vsel %vm39, %v28, 0
    %v83 = vsel %vm39, %v29, 0
    %v86 = vsel %vm39, %v30, 0
    %v89 = vsel %vm39, %v31, 0
    %91 = vmatprep.subr.mxu0 0.0
    %92 = vmatpush1.xpose.msra.mxu0 %v44
    %93 = vmatprep.subr.mxu0 0.0
    %94 = vmatpush1.xpose.msra.mxu0 %v47
    %95 = vmatprep.subr.mxu0 0.0
    %96 = vmatpush1.xpose.msra.mxu0 %v50
    %97 = vmatprep.subr.mxu0 0.0
    %98 = vmatpush1.xpose.msra.mxu0 %v53
    %99 = vmatprep.subr.mxu0 0.0
    %100 = vmatpush1.xpose.msra.mxu0 %v56
    %101 = vmatprep.subr.mxu0 0.0
    %102 = vmatpush1.xpose.msra.mxu0 %v59
    %103 = vmatprep.subr.mxu0 0.0
    %104 = vmatpush1.xpose.msra.mxu0 %v62
    %105 = vmatprep.subr.mxu0 0.0
    %106 = vmatpush1.xpose.msra.mxu0 %v65
    %107 = vmatprep.subr.mxu0 0.0
    %108 = vmatpush1.xpose.msra.mxu0 %v68
    %109 = vmatprep.subr.mxu0 0.0
    %110 = vmatpush1.xpose.msra.mxu0 %v71
    %111 = vmatprep.subr.mxu0 0.0
    %112 = vmatpush1.xpose.msra.mxu0 %v74
    %113 = vmatprep.subr.mxu0 0.0
    %114 = vmatpush1.xpose.msra.mxu0 %v77
    %115 = vmatprep.subr.mxu0 0.0
    %116 = vmatpush1.xpose.msra.mxu0 %v80
    %117 = vmatprep.subr.mxu0 0.0
    %118 = vmatpush1.xpose.msra.mxu0 %v83
    %119 = vmatprep.subr.mxu0 0.0
    %120 = vmatpush1.xpose.msra.mxu0 %v86
    %121 = vmatprep.subr.mxu0 0.0
    %122 = vmatpush1.xpose.msra.mxu0 %v89
    %123 = vmatprep.subr.mxu0 0.0
    %124 = vmatpush1.xpose.msra.mxu0 0.0
    %125 = vmatprep.subr.mxu0 0.0
    %126 = vmatpush1.xpose.msra.mxu0 0.0
    %127 = vmatprep.subr.mxu0 0.0
    %128 = vmatpush1.xpose.msra.mxu0 0.0
    %129 = vmatprep.subr.mxu0 0.0
    %130 = vmatpush1.xpose.msra.mxu0 0.0
    %131 = vmatprep.subr.mxu0 0.0
    %132 = vmatpush1.xpose.msra.mxu0 0.0
    %133 = vmatprep.subr.mxu0 0.0
    %134 = vmatpush1.xpose.msra.mxu0 0.0
    %135 = vmatprep.subr.mxu0 0.0
    %136 = vmatpush1.xpose.msra.mxu0 0.0
    %137 = vmatprep.subr.mxu0 0.0
    %138 = vmatpush1.xpose.msra.mxu0 0.0
    %139 = vmatprep.subr.mxu0 0.0
    %140 = vmatpush1.xpose.msra.mxu0 0.0
    %141 = vmatprep.subr.mxu0 0.0
    %142 = vmatpush1.xpose.msra.mxu0 0.0
    %143 = vmatprep.subr.mxu0 0.0
    %144 = vmatpush1.xpose.msra.mxu0 0.0
    %145 = vmatprep.subr.mxu0 0.0
    %146 = vmatpush1.xpose.msra.mxu0 0.0
    %147 = vmatprep.subr.mxu0 0.0
    %148 = vmatpush1.xpose.msra.mxu0 0.0
    %149 = vmatprep.subr.mxu0 0.0
    %150 = vmatpush1.xpose.msra.mxu0 0.0
    %151 = vmatprep.subr.mxu0 0.0
    %152 = vmatpush1.xpose.msra.mxu0 0.0
    %153 = vmatprep.subr.mxu0 0.0
    %154 = vmatpush1.xpose.msra.mxu0 0.0
    %155 = vmatprep.mubr.f32.mxu0 0.0
    %156 = vmatmul.mubr.f32.gmra.mrb[0].mxu0 %v41
    %v157 = vpop.f32.mrb[0].mxu0
    %v158 = vadd.f32 %v37, %v157
    %v159 = vpop.f32.mrb[0].mxu0
    %160 = vdwg.mxu0
    %v161 = vmax.f32 %v158, 0.0
    %v162 = vsub.f32 0.0, %v161
    %v163 = vmul.f32 %v162, 1.442695
    %v164 = vpow.pop %v163
    %165 = vst [vmem:[#allocation2] sm:$0xff] %v164
    // Predicated region
    $region14: #{tpu_custom_call.1} parent=1 // pred_check
      _
    $region15: #{tpu_custom_call.1} parent=1 // pred_check_branch
      %167 = sbr.rel (0) target = $region17
    $region16: #{tpu_custom_call.1} parent=1 // pred_region
      %s169 = ssub.s32 128, 128
      %170 = vsyncadd [#allocation3], %s169
      %s172 = sshll.u32 [#allocation2], 4
      %s173 = int_to_ptr.vmem [resolvable:$true] %s172
      %175 = dma.vmem_to_hbm [thread:$0]  %s173, 128, %s3, [#allocation3]
    $region17: #{tpu_custom_call.1} parent=1 // pred_fallthru
      _
    // Predicated region
    $region18: #{tpu_custom_call.1} parent=1 // pred_check
      _
    $region19: #{tpu_custom_call.1} parent=1 // pred_check_branch
      %177 = sbr.rel (0) target = $region21
    $region20: #{tpu_custom_call.1} parent=1 // pred_region
      %178 = dma.done [#allocation3], 128
    $region21: #{tpu_custom_call.1} parent=1 // pred_fallthru
      _
    %179 = vsyncpa [#allocation3], 1

</llo_original>
